<compile_context>
chip_gen: v6e
topology: v6e:2x2x1
jax: 0.10.0
libtpu: 0.0.40
codegen_flags: <defaults>
</compile_context>

<pallas_src>
from typing import NamedTuple, Tuple

import jax
import jax.numpy as jnp
from jax.experimental import pallas as pl
from jax.experimental.pallas import tpu as pltpu


# ---------------------------------------------------------------------------
# VMEM budget / tile selection helpers
# ---------------------------------------------------------------------------
def _scoped_vmem_limit_bytes():
    """Generation-aware scoped-VMEM limit (bytes)."""
    try:
        cap = pltpu.get_tpu_info().vmem_capacity_bytes
    except Exception:  # interpret mode / older runtimes
        cap = 64 << 20
    # ~75% of physical VMEM, capped to leave Mosaic internal-scratch headroom:
    #   v5e/v6e (128 MiB)  -> 96 MiB scoped;   v7x (64 MiB per TC) -> 48 MiB.
    return min(int(cap) * 3 // 4, 96 << 20)


def _pick_tile(dim, preferred, align):
    """Largest multiple of `align` that divides `dim` and is <= `preferred`.

    Falls back to the full dim (always a legal block shape).
    """
    if dim <= preferred:
        return dim
    best = None
    t = align
    while t <= preferred:
        if dim % t == 0:
            best = t
        t += align
    return best if best is not None else dim


def _choose_tiles(B, S, H, n_hidden, itemsize, vmem_limit,
                  block_b=None, block_s=None, block_h=None):
    # Batch tile: multiple of 8 (sublane of the 2-D mask/out blocks) or full B.
    tb = block_b if block_b is not None else (B if B <= 8 else _pick_tile(B, 8, 8))
    # Hidden tile: lane axis; multiple of 128 (or full H) keeps the output
    # block lane-dense (unmasked vst).
    th = block_h if block_h is not None else _pick_tile(H, 512, 128)

    # Per-hidden-input streamed-tile byte budget (each input is double-buffered
    # by the pipeline; reserve ~75% of the scoped limit for the hidden tiles,
    # the rest covers the mask tiles, accumulator and output blocks).
    budget = (vmem_limit * 3 // 4) // (2 * max(1, n_hidden))

    if block_s is not None:
        ts = block_s
    else:
        ts_pref = max(128, (budget // max(1, tb * th * itemsize)) // 128 * 128)
        ts = _pick_tile(S, ts_pref, 128)

    # If the whole sequence fits in one tile, spend leftover budget on batch
    # (typical SimCSE shapes: short S, large B).
    if block_b is None and B > 8 and ts == S:
        tb_max = max(8, (budget // max(1, S * th * itemsize)) // 8 * 8)
        tb = _pick_tile(B, min(64, tb_max), 8)

    # v7x has 2 TensorCores: make sure the parallel grid dims have >= 2 steps.
    if block_b is None and block_h is None and (B // tb) * (H // th) < 2:
        if th % 256 == 0:
            th //= 2
        elif tb % 16 == 0:
            tb //= 2

    return tb, ts, th


# ---------------------------------------------------------------------------
# Kernels
# ---------------------------------------------------------------------------
def _cls_kernel(h_ref, o_ref):
    # h_ref: (B, TS0, TH) -- only token 0 is used.  TS0 == min(S, 8) keeps the
    # block sublane-aligned while DMA-ing ~S/8x less than the full sequence.
    o_ref[...] = h_ref[:, 0, :]


def _make_masked_mean_kernel(n_hidden):
    """Masked mean over the sequence axis of the sum of `n_hidden` layers.

    The (B, S) mask input already carries the 1/(n_hidden * mask_count) scale,
    so the finalize branch is a pure cast.  Fully-padded S tiles are skipped
    via the scalar-prefetched per-batch-tile live-tile count.
    """

    def kernel(*refs):
        nt_ref = refs[0]                       # SMEM (num_b_tiles,) int32
        mask_ref = refs[1]                     # (TB, TS) f32, pre-scaled
        h_refs = refs[2:2 + n_hidden]          # (TB, TS, TH) each
        o_ref = refs[2 + n_hidden]             # (TB, TH)
        acc_ref = refs[3 + n_hidden]           # (TB, TH) f32 scratch

        b_idx = pl.program_id(0)
        s_idx = pl.program_id(2)

        @pl.when(s_idx == 0)
        def _init():
            acc_ref[...] = jnp.zeros_like(acc_ref)

        # Skip sequence tiles that contain no live tokens for this batch tile.
        @pl.when(s_idx < nt_ref[b_idx])
        def _accumulate():
            # Sum of the contributing layers for this tile, accumulated in f32
            # (also correct/precise if the hidden states are bf16).
            h = h_refs[0][...].astype(jnp.float32)
            for hr in h_refs[1:]:
                h = h + hr[...].astype(jnp.float32)
            acc_ref[...] += jnp.sum(h * mask_ref[...][:, :, None], axis=1)

        @pl.when(s_idx == pl.num_programs(2) - 1)
        def _finalize():
            o_ref[...] = acc_ref[...].astype(o_ref.dtype)

    return kernel


# ---------------------------------------------------------------------------
# Wrappers (pallas_call glue)
# ---------------------------------------------------------------------------
def _cls_pool(last_hidden, *, block_h=None):
    # NOTE: a plain XLA slice `last_hidden[:, 0, :]` is already roofline
    # optimal for this path; the kernel is kept for completeness and runs as a
    # single grid step whenever the (B, 8, H) sliver fits VMEM.
    B, S, H = last_hidden.shape
    itemsize = jnp.dtype(last_hidden.dtype).itemsize
    vmem_limit = _scoped_vmem_limit_bytes()
    ts0 = min(S, 8)

    if block_h is not None:
        assert H % block_h == 0, "block_h must divide H"
        th = block_h
    elif 2 * B * ts0 * H * itemsize <= vmem_limit * 3 // 4:
        th = H                               # single grid step
    else:
        th_pref = max(128, (vmem_limit * 3 // 4)
                      // max(1, 2 * B * ts0 * itemsize) // 128 * 128)
        th = _pick_tile(H, th_pref, 128)

    return pl.pallas_call(
        _cls_kernel,
        out_shape=jax.ShapeDtypeStruct((B, H), last_hidden.dtype),
        grid=(H // th,),
        in_specs=[pl.BlockSpec((B, ts0, th), lambda h: (0, 0, h))],
        out_specs=pl.BlockSpec((B, th), lambda h: (0, h)),
        compiler_params=pltpu.CompilerParams(
            dimension_semantics=("parallel",),
            vmem_limit_bytes=vmem_limit,
        ),
    )(last_hidden)


def _mask_index_map(b, h, s, nt):
    # Clamp the sequence block index so fully-padded tiles re-use the resident
    # block (no re-DMA); the kernel's pl.when gates the compute.
    return (b, jnp.minimum(s, nt[b] - 1))


def _hidden_index_map(b, h, s, nt):
    return (b, jnp.minimum(s, nt[b] - 1), h)


def _out_index_map(b, h, s, nt):
    return (b, h)


def _masked_mean_pool(attention_mask, hiddens, *,
                      block_b=None, block_s=None, block_h=None):
    n_hidden = len(hiddens)
    B, S, H = hiddens[0].shape
    out_dtype = hiddens[0].dtype
    itemsize = jnp.dtype(out_dtype).itemsize
    vmem_limit = _scoped_vmem_limit_bytes()

    if block_b is not None:
        assert B % block_b == 0, "block_b must divide B"
        assert block_b == B or block_b % 8 == 0, \
            "block_b must be a multiple of 8 or equal B"
    if block_s is not None:
        assert S % block_s == 0, "block_s must divide S"
        assert block_s == S or block_s % 128 == 0, \
            "block_s must be a multiple of 128 or equal S"
    if block_h is not None:
        assert H % block_h == 0, "block_h must divide H"
        assert block_h == H or block_h % 128 == 0, \
            "block_h must be a multiple of 128 or equal H"

    tb, ts, th = _choose_tiles(B, S, H, n_hidden, itemsize, vmem_limit,
                               block_b, block_s, block_h)
    assert B % tb == 0 and S % ts == 0 and H % th == 0

    mask_f = attention_mask.astype(jnp.float32)                    # (B, S)
    # Denominator computed once outside the grid; the full per-row scale
    # (1/n_hidden)/count is folded into the mask (kept in f32 for precision).
    # NOTE: an all-zero mask row yields nan, matching the PyTorch module.
    den = jnp.sum(mask_f, axis=-1, keepdims=True)                  # (B, 1)
    mask_scaled = mask_f * (jnp.float32(1.0 / n_hidden) / den)     # (B, S) f32

    num_b_tiles, num_h_tiles, num_s_tiles = B // tb, H // th, S // ts

    # Per-batch-tile count of sequence tiles containing at least one live
    # (nonzero-mask) token; trailing fully-padded tiles are skipped entirely.
    token_idx = jnp.arange(S, dtype=jnp.int32)[None, :]
    last_live = jnp.max(jnp.where(mask_f > 0, token_idx + 1, 0), axis=-1)
    last_live_bt = jnp.max(last_live.reshape(num_b_tiles, tb), axis=-1)
    ntiles = jnp.clip((last_live_bt + ts - 1) // ts, 1,
                      num_s_tiles).astype(jnp.int32)               # (num_b_tiles,)

    kernel = _make_masked_mean_kernel(n_hidden)

    in_specs = [
        pl.BlockSpec((tb, ts), _mask_index_map),                   # scaled mask
    ] + [
        pl.BlockSpec((tb, ts, th), _hidden_index_map)              # hidden(s)
        for _ in range(n_hidden)
    ]

    bytes_accessed = (n_hidden * B * S * H * itemsize              # hiddens
                      + B * S * 4                                  # scaled mask
                      + B * H * itemsize)                          # output
    cost = pl.CostEstimate(
        flops=2 * (n_hidden + 1) * B * S * H,
        transcendentals=0,
        bytes_accessed=bytes_accessed,
    )

    return pl.pallas_call(
        kernel,
        out_shape=jax.ShapeDtypeStruct((B, H), out_dtype),
        grid_spec=pltpu.PrefetchScalarGridSpec(
            num_scalar_prefetch=1,
            grid=(num_b_tiles, num_h_tiles, num_s_tiles),
            in_specs=in_specs,
            out_specs=pl.BlockSpec((tb, th), _out_index_map),
            scratch_shapes=[pltpu.VMEM((tb, th), jnp.float32)],
        ),
        compiler_params=pltpu.CompilerParams(
            dimension_semantics=("parallel", "parallel", "arbitrary"),
            vmem_limit_bytes=vmem_limit,
        ),
        cost_estimate=cost,
    )(ntiles, mask_scaled, *hiddens)


# ---------------------------------------------------------------------------
# Module-equivalent
# ---------------------------------------------------------------------------
class ModelOutputs(NamedTuple):
    last_hidden_state: jnp.ndarray
    pooler_output: jnp.ndarray
    hidden_states: Tuple[jnp.ndarray, ...]


class Pooler:
    """JAX/Pallas port of the parameter-free ESimCSE Pooler."""

    def __init__(self, pooler_type):
        assert pooler_type in [
            'cls', 'cls_before_pooler', 'avg', 'avg_top2', 'avg_first_last'
        ], 'unrecognized pooling type %s' % pooler_type
        self.pooler_type = pooler_type

    def __call__(self, attention_mask, outputs: ModelOutputs, *,
                 block_b=None, block_s=None, block_h=None):
        last_hidden = outputs.last_hidden_state
        hidden_states = outputs.hidden_states
        tiles = dict(block_b=block_b, block_s=block_s, block_h=block_h)
        if self.pooler_type in ('cls_before_pooler', 'cls'):
            return _cls_pool(last_hidden, block_h=block_h)
        elif self.pooler_type == 'avg':
            return _masked_mean_pool(attention_mask, (last_hidden,), **tiles)
        elif self.pooler_type == 'avg_first_last':
            return _masked_mean_pool(
                attention_mask, (hidden_states[0], hidden_states[-1]), **tiles)
        elif self.pooler_type == 'avg_top2':
            return _masked_mean_pool(
                attention_mask, (hidden_states[-1], hidden_states[-2]), **tiles)
        else:
            raise NotImplementedError


# ---------------------------------------------------------------------------
# Pure-JAX reference (for verification)
# ---------------------------------------------------------------------------
def _ref_pooler(pooler_type, attention_mask, outputs: ModelOutputs):
    last_hidden = outputs.last_hidden_state
    hs = outputs.hidden_states
    am = attention_mask.astype(jnp.float32)
    if pooler_type in ('cls_before_pooler', 'cls'):
        return last_hidden[:, 0]
    if pooler_type == 'avg':
        return (last_hidden * am[..., None]).sum(1) / am.sum(-1)[..., None]
    if pooler_type == 'avg_first_last':
        h = (hs[0] + hs[-1]) / 2.0
        return (h * am[..., None]).sum(1) / am.sum(-1)[..., None]
    if pooler_type == 'avg_top2':
        h = (hs[-1] + hs[-2]) / 2.0
        return (h * am[..., None]).sum(1) / am.sum(-1)[..., None]
    raise NotImplementedError


# ---------------------------------------------------------------------------
# Main
# ---------------------------------------------------------------------------
if __name__ == "__main__":
    # Small but grid-exercising shapes: with block_s=block_h=128 the masked
    # mean runs a (1, 2, 2) grid so the accumulator init/finalize path is hit.
    B, S, H = 4, 256, 256
    n_layers = 3  # hidden_states = embeddings + layers

    key = jax.random.PRNGKey(0)
    k_hs, k_mask, k_pool = jax.random.split(key, 3)

    hidden_states = tuple(
        jax.random.normal(jax.random.fold_in(k_hs, i), (B, S, H), jnp.float32)
        for i in range(n_layers + 1)
    )
    last_hidden = hidden_states[-1]
    pooler_output = jax.random.normal(k_pool, (B, H), jnp.float32)

    # attention mask: 1s then 0s padding (every row has at least one token).
    lengths = jnp.array([S, S - 56, 131, 97], dtype=jnp.int32)
    attention_mask = (jnp.arange(S)[None, :] < lengths[:, None]).astype(jnp.float32)

    outputs = ModelOutputs(
        last_hidden_state=last_hidden,
        pooler_output=pooler_output,
        hidden_states=hidden_states,
    )

    ok = True
    for ptype in ['cls', 'cls_before_pooler', 'avg', 'avg_top2', 'avg_first_last']:
        pooler = Pooler(ptype)
        out = pooler(attention_mask, outputs, block_s=128, block_h=128)
        out = jax.block_until_ready(out)
        ref = _ref_pooler(ptype, attention_mask, outputs)
        if not jnp.allclose(out, ref, atol=1e-5, rtol=1e-5):
            ok = False
            err = float(jnp.max(jnp.abs(out - ref)))
            print(f"MISMATCH for pooler_type={ptype}, max_abs_err={err}")

    # Also exercise the auto-chosen tiles (generation-aware budget + megacore
    # split path at this size).
    out2 = jax.block_until_ready(Pooler('avg')(attention_mask, outputs))
    if not jnp.allclose(out2, _ref_pooler('avg', attention_mask, outputs),
                        atol=1e-5, rtol=1e-5):
        ok = False
        print("MISMATCH for pooler_type=avg (auto tiles)")

    # Exercise the padded-tile skip path: all rows shorter than one 128-token
    # tile, so with block_s=128 the second S tile is skipped entirely.
    short_lengths = jnp.array([100, 90, 64, 1], dtype=jnp.int32)
    short_mask = (jnp.arange(S)[None, :] < short_lengths[:, None]).astype(jnp.float32)
    for ptype in ['avg', 'avg_top2']:
        out3 = jax.block_until_ready(
            Pooler(ptype)(short_mask, outputs, block_s=128, block_h=128))
        ref3 = _ref_pooler(ptype, short_mask, outputs)
        if not jnp.allclose(out3, ref3, atol=1e-5, rtol=1e-5):
            ok = False
            err = float(jnp.max(jnp.abs(out3 - ref3)))
            print(f"MISMATCH (skip path) for pooler_type={ptype}, max_abs_err={err}")

    if ok:
        print("KERNEL_OK")
</pallas_src>

<mosaic_0001>
module attributes {stable_mosaic.version = 11 : i64} {
  func.func @_cls_kernel(%arg0: i32, %arg1: memref<4x8x128xf32, #tpu.memory_space<vmem>>, %arg2: memref<4x128xf32, #tpu.memory_space<vmem>>) attributes {dimension_semantics = [#tpu.dimension_semantics<parallel>], iteration_bounds = array<i64: 2>, scalar_prefetch = 0 : i64, scratch_operands = 0 : i64, tpu.core_type = #tpu.core_type<tc>, window_params = [{transform_indices = @transform_0, window_bounds = array<i64: 4, 8, 128>}, {transform_indices = @transform_1, window_bounds = array<i64: 4, 128>}]} {
    %c0 = arith.constant 0 : index
    %c0_0 = arith.constant 0 : index
    %c0_1 = arith.constant 0 : index
    %0 = vector.load %arg1[%c0, %c0_0, %c0_1] : memref<4x8x128xf32, #tpu.memory_space<vmem>>, vector<4x1x128xf32>
    %1 = vector.shape_cast %0 : vector<4x1x128xf32> to vector<4x128xf32>
    %c0_2 = arith.constant 0 : index
    %c0_3 = arith.constant 0 : index
    %2 = vector.load %arg2[%c0_2, %c0_3] : memref<4x128xf32, #tpu.memory_space<vmem>>, vector<4x128xf32>
    tpu.vector_store %arg2[%c0_2, %c0_3], %1 {strides = array<i32>} : memref<4x128xf32, #tpu.memory_space<vmem>>, vector<4x128xf32>,
    return
  }
  func.func @transform_0(%arg0: i32) -> (i32, i32, i32) {
    %c0_i32 = arith.constant 0 : i32
    %c0_i32_0 = arith.constant 0 : i32
    %c0_i32_1 = arith.constant 0 : i32
    return %c0_i32, %c0_i32_0, %arg0 : i32, i32, i32
  }
  func.func @transform_1(%arg0: i32) -> (i32, i32) {
    %c0_i32 = arith.constant 0 : i32
    %c0_i32_0 = arith.constant 0 : i32
    return %c0_i32, %arg0 : i32, i32
  }
}

</mosaic_0001>

<llo_original>
// kernel: tpu_custom_call.1
$region0: #{tpu_custom_call.1}
  #allocation0 [shape = 'u32[]', space=smem, size = 0x4, offset = 0x4, fixed_abs, tag = 'smem constant byte address 0x4 - core index']
  #allocation1 [shape = 'u32[144,128]{1,0:T(1,128)}', space=vmem, size = 0x12000, scoped, tag = 'internal scratch']
  %s0 = inlined_call_operand.hbm [shape: f32[4,256,256], index: 0, kind: input, shape index: {}]
  %s1 = inlined_call_operand.hbm [shape: f32[4,256], index: 1, kind: output, shape index: {}]
  %s2 = sld [smem:[#allocation0]]
  $region41: #{tpu_custom_call.1} parent=0
    _
  %s4 = ssub.s32 1, %s2
  %s5 = scalar_select 0, %s4, %s2
  $region1: #{tpu_custom_call.1} parent=0
    #allocation2 [shape = 'u8[32768]{0}', space=vmem, size = 0x8000, scoped, tag = 'input window, operand 0']
    #allocation3 [shape = 's32[2]{0}', space=sflag, size = 0x8, scoped, tag = 'scoped memory for tpu_custom_call.1']
    #allocation4 [shape = 's32[2]{0}', space=sflag, size = 0x8, scoped, tag = 'scoped memory for tpu_custom_call.1']
    #allocation5 [shape = 'u8[4096]{0}', space=vmem, size = 0x1000, scoped, tag = 'output window, operand 0']
    %6 = vsyncpa [#allocation3], 0
    %s7 = scalar_lea.sflag [#allocation3], 1
    %8 = vsyncpa %s7, 0
    %9 = vsyncpa [#allocation4], 0
    %s10 = scalar_lea.sflag [#allocation4], 1
    %11 = vsyncpa %s10, 0
    loop: start=0, step=1, limit=4
    $region2: #{tpu_custom_call.1} parent=1 // loop_pre_header
      _
    $region3: #{tpu_custom_call.1} parent=1 // loop_header
      %s13 = sphi 0, %s17
      %p14 = scmp.ge.s32.totalorder %s13, 4
      %s23 = sphi 0, %s25
      %s26 = sphi 0, %s23
      %s27 = sphi 0, %s26
      %s43 = sphi 0, %s27
      %s49 = sphi 0, %s51
      %s52 = sphi 0, %s49
      %s53 = sphi 0, %s52
      %s69 = sphi 0, %s53
    $region4: #{tpu_custom_call.1} parent=1 // loop_header_branch
      %16 = sbr.rel (%p14) target = $region8
    $region5: #{tpu_custom_call.1} parent=1 // loop_body
      %s18 = ssub.s32 %s13, 1
      %s19 = ssub.s32 %s13, 2
      %s20 = sadd.s32 %s13, 1
      %s21 = ssub.s32 %s13, %s20
      %p22 = scmp.eq.s32.totalorder %s21, 0
      %s24 = sadd.s32 %s23, 1
      %s25 = scalar_select %p22, %s23, %s24
      %p28 = pneg %p22
      %p29 = scmp.eq.s32.totalorder %s13, 1
      %p30 = por %p28, %p29
      %p31 = scmp.ne.s32.totalorder %s23, %s26
      %p32 = scmp.eq.s32.totalorder %s13, 0
      %p33 = por %p31, %p32
      %p34 = scmp.ne.s32.totalorder %s23, %s26
      %p35 = scmp.eq.s32.totalorder %s18, 1
      %p36 = por %p34, %p35
      %p37 = scmp.ne.s32.totalorder %s26, %s27
      %p38 = scmp.eq.s32.totalorder %s18, 0
      %p39 = por %p37, %p38
      %p40 = scmp.ne.s32.totalorder %s26, %s27
      %p41 = scmp.eq.s32.totalorder %s19, 1
      %p42 = por %p40, %p41
      %p44 = scmp.ne.s32.totalorder %s27, %s43
      %p45 = scmp.eq.s32.totalorder %s19, 0
      %p46 = por %p44, %p45
      %s47 = ssub.s32 %s13, %s20
      %p48 = scmp.eq.s32.totalorder %s47, 0
      %s50 = sadd.s32 %s49, 1
      %s51 = scalar_select %p48, %s49, %s50
      %p54 = pneg %p48
      %p55 = scmp.eq.s32.totalorder %s13, 1
      %p56 = por %p54, %p55
      %p57 = scmp.ne.s32.totalorder %s49, %s52
      %p58 = scmp.eq.s32.totalorder %s13, 0
      %p59 = por %p57, %p58
      %p60 = scmp.ne.s32.totalorder %s49, %s52
      %p61 = scmp.eq.s32.totalorder %s18, 1
      %p62 = por %p60, %p61
      %p63 = scmp.ne.s32.totalorder %s52, %s53
      %p64 = scmp.eq.s32.totalorder %s18, 0
      %p65 = por %p63, %p64
      %p66 = scmp.ne.s32.totalorder %s52, %s53
      %p67 = scmp.eq.s32.totalorder %s19, 1
      %p68 = por %p66, %p67
      %p70 = scmp.ne.s32.totalorder %s53, %s69
      %p71 = scmp.eq.s32.totalorder %s19, 0
      %p72 = por %p70, %p71
      %p73 = scmp.le.s32.totalorder 1, %s13
      %p74 = scmp.lt.s32.totalorder %s13, 3
      %p75 = pnand %p73, %p74
      %p76 = pneg %p75
      // Predicated region
      $region9: #{tpu_custom_call.1} parent=5 // pred_check
        _
      $region10: #{tpu_custom_call.1} parent=5 // pred_check_branch
        %78 = sbr.rel (%p75) target = $region12
      $region11: #{tpu_custom_call.1} parent=5 // pred_region
        %s79 = ssub.s32 %s13, 1
      $region12: #{tpu_custom_call.1} parent=5 // pred_fallthru
        _
      %p80 = scmp.lt.s32.totalorder %s13, 2
      // Predicated region
      $region13: #{tpu_custom_call.1} parent=5 // pred_check
        %p81 = pneg %p80
      $region14: #{tpu_custom_call.1} parent=5 // pred_check_branch
        %83 = sbr.rel (%p81) target = $region16
      $region15: #{tpu_custom_call.1} parent=5 // pred_region
        // Predicated region
        $region17: #{tpu_custom_call.1} parent=15 // pred_check
          %p84 = pneg %p33
        $region18: #{tpu_custom_call.1} parent=15 // pred_check_branch
          %86 = sbr.rel (%p84) target = $region20
        $region19: #{tpu_custom_call.1} parent=15 // pred_region
          %s87 = sand.u32 %s23, 1
          %s88 = scalar_lea.sflag [#allocation3], %s87
          %s89 = sand.u32 %s23, 1
          %s90 = smul.addr %s89, 32
          %s91 = scalar_lea.vmem [#allocation2], %s90
          %s93 = ssub.s32 512, 512
          %94 = vsyncadd %s88, %s93
          %s95 = smul.addr %s13, 128
          %s96 = scalar_lea.hbm %s0, %s95
          %s97 = sshll.u32 %s91, 4
          %s98 = int_to_ptr.vmem [resolvable:$true] %s97
          %103 = dma.hbm_to_vmem [thread:$0]  %s96, 512, %s98, %s88, 8192, 128, 8
        $region20: #{tpu_custom_call.1} parent=15 // pred_fallthru
          _
      $region16: #{tpu_custom_call.1} parent=5 // pred_fallthru
        _
      %p104 = scmp.le.s32.totalorder 1, %s13
      %p105 = scmp.lt.s32.totalorder %s13, 3
      %p106 = pnand %p104, %p105
      %p107 = pneg %p106
      // Predicated region
      $region21: #{tpu_custom_call.1} parent=5 // pred_check
        _
      $region22: #{tpu_custom_call.1} parent=5 // pred_check_branch
        %109 = sbr.rel (%p106) target = $region24
      $region23: #{tpu_custom_call.1} parent=5 // pred_region
        %s110 = ssub.s32 %s13, 1
        %s111 = sand.u32 %s26, 1
        %s112 = scalar_lea.sflag [#allocation3], %s111
        %s113 = sand.u32 %s26, 1
        %s114 = smul.addr %s113, 32
        %s115 = scalar_lea.vmem [#allocation2], %s114
        // Predicated region
        $region25: #{tpu_custom_call.1} parent=23 // pred_check
          %p116 = pneg %p39
        $region26: #{tpu_custom_call.1} parent=23 // pred_check_branch
          %118 = sbr.rel (%p116) target = $region28
        $region27: #{tpu_custom_call.1} parent=23 // pred_region
          %119 = dma.done %s112, 512
        $region28: #{tpu_custom_call.1} parent=23 // pred_fallthru
          _
        %s120 = sand.u32 %s26, 1
        %s121 = scalar_lea.sflag [#allocation3], %s120
        %s122 = sand.u32 %s26, 1
        %s123 = smul.addr %s122, 32
        %s124 = scalar_lea.vmem [#allocation2], %s123
        %p125 = pneg %p39
        %p126 = pneg %p36
        %p127 = pneg %p65
        %p128 = pneg %p62
        %s129 = sand.u32 %s52, 1
        %s130 = scalar_lea.sflag [#allocation4], %s129
        %s131 = sand.u32 %s52, 1
        %s132 = smul.addr %s131, 4
        %s133 = scalar_lea.vmem [#allocation5], %s132
        %v134 = vld [vmem:[%s115] sm:$0x1]
        %v135 = vld [vmem:[%s115 + $0x8] sm:$0x1]
        %v136 = vld [vmem:[%s115 + $0x10] sm:$0x1]
        %v137 = vld [vmem:[%s115 + $0x18] sm:$0x1]
        %v142 = vrot.slane %v135, 7
        %vm143 = vcmask 1041409
        %v144 = vsel %vm143, %v142, %v134
        %v145 = vrot.slane %v136, 6
        %vm146 = vcmask 1042434
        %v147 = vsel %vm146, %v145, %v144
        %v148 = vrot.slane %v137, 5
        %vm149 = vcmask 1043459
        %v150 = vsel %vm149, %v148, %v147
        %152 = vst [vmem:[%s133] sm:$0xf] %v150
        %s153 = sand.u32 %s52, 1
        %s154 = scalar_lea.sflag [#allocation4], %s153
        %s155 = sand.u32 %s52, 1
        %s156 = smul.addr %s155, 4
        %s157 = scalar_lea.vmem [#allocation5], %s156
        // Predicated region
        $region29: #{tpu_custom_call.1} parent=23 // pred_check
          %p158 = pneg %p62
        $region30: #{tpu_custom_call.1} parent=23 // pred_check_branch
          %160 = sbr.rel (%p158) target = $region32
        $region31: #{tpu_custom_call.1} parent=23 // pred_region
          %s162 = ssub.s32 64, 64
          %163 = vsyncadd %s154, %s162
          %s164 = smul.addr %s18, 64
          %s165 = scalar_lea.hbm %s1, %s164
          %s167 = sshll.u32 %s157, 4
          %s168 = int_to_ptr.vmem [resolvable:$true] %s167
          %170 = dma.vmem_to_hbm [thread:$0]  %s168, 64, %s165, %s154
        $region32: #{tpu_custom_call.1} parent=23 // pred_fallthru
          _
      $region24: #{tpu_custom_call.1} parent=5 // pred_fallthru
        _
      %p171 = scmp.le.s32.totalorder 2, %s13
      // Predicated region
      $region33: #{tpu_custom_call.1} parent=5 // pred_check
        %p172 = pneg %p171
      $region34: #{tpu_custom_call.1} parent=5 // pred_check_branch
        %174 = sbr.rel (%p172) target = $region36
      $region35: #{tpu_custom_call.1} parent=5 // pred_region
        %s175 = ssub.s32 %s13, 2
        // Predicated region
        $region37: #{tpu_custom_call.1} parent=35 // pred_check
          %p176 = pneg %p68
        $region38: #{tpu_custom_call.1} parent=35 // pred_check_branch
          %178 = sbr.rel (%p176) target = $region40
        $region39: #{tpu_custom_call.1} parent=35 // pred_region
          %s179 = sand.u32 %s53, 1
          %s180 = scalar_lea.sflag [#allocation4], %s179
          %s181 = sand.u32 %s53, 1
          %s182 = smul.addr %s181, 4
          %s183 = scalar_lea.vmem [#allocation5], %s182
          %184 = dma.done %s180, 64
        $region40: #{tpu_custom_call.1} parent=35 // pred_fallthru
          _
      $region36: #{tpu_custom_call.1} parent=5 // pred_fallthru
        _
    $region6: #{tpu_custom_call.1} parent=1 // loop_footer
      %s17 = sadd.s32 1, %s13
    $region7: #{tpu_custom_call.1} parent=1 // loop_footer_branch
      %12 = sbr.rel target = $region3
    $region8: #{tpu_custom_call.1} parent=1 // loop_exit
      _
    %185 = vsyncpa [#allocation3], 1
    %s186 = scalar_lea.sflag [#allocation3], 1
    %187 = vsyncpa %s186, 1
    %188 = vsyncpa [#allocation4], 1
    %s189 = scalar_lea.sflag [#allocation4], 1
    %190 = vsyncpa %s189, 1

</llo_original>
